<compile_context>
chip_gen: v7x
topology: tpu7x:2x2x1
jax: 0.10.0
libtpu: 0.0.40
codegen_flags: <defaults>
</compile_context>

<pallas_src>
import jax
import jax.numpy as jnp
from jax import lax
from jax.experimental import pallas as pl
from jax.experimental.pallas import tpu as pltpu

INPUT_SIZE = 6
HIDDEN_SIZE = 10
OUTPUT_SIZE = 2

# Packed-weight slab layout (single aligned, VMEM-resident operand).
# Weights are stored in PyTorch orientation (out_features, in_features); the
# bias is the extra column at index `fan_in`.  Each layer's block starts on an
# 8-sublane boundary so static ref slices need no relayout.
_W1_ROW, _W2_ROW, _W3_ROW = 0, 16, 32
_SLAB_ROWS, _SLAB_COLS = 40, 16


def _round_up(n, m):
    return ((n + m - 1) // m) * m


def mlp_kernel(x_ref, w_ref, o_ref):
    """Batch-in-lanes MLP forward for one batch tile.

    x_ref: (TB, 6)   input rows for this tile (natural HBM layout)
    w_ref: (40, 16)  packed weights+biases, resident in VMEM across tiles
    o_ref: (2, TB)   log-probabilities: classes on sublanes, batch on lanes
    """
    x = x_ref[...]                                                      # (TB, 6)

    w1 = w_ref[_W1_ROW:_W1_ROW + HIDDEN_SIZE, 0:INPUT_SIZE]             # (10, 6)
    b1 = w_ref[_W1_ROW:_W1_ROW + HIDDEN_SIZE, INPUT_SIZE:INPUT_SIZE + 1]
    w2 = w_ref[_W2_ROW:_W2_ROW + HIDDEN_SIZE, 0:HIDDEN_SIZE]            # (10, 10)
    b2 = w_ref[_W2_ROW:_W2_ROW + HIDDEN_SIZE, HIDDEN_SIZE:HIDDEN_SIZE + 1]
    w3 = w_ref[_W3_ROW:_W3_ROW + OUTPUT_SIZE, 0:HIDDEN_SIZE]            # (2, 10)
    b3 = w_ref[_W3_ROW:_W3_ROW + OUTPUT_SIZE, HIDDEN_SIZE:HIDDEN_SIZE + 1]

    # Layer 1: (10, TB) = W1 (10,6) · x^T.  Contract both operands on their
    # last dim (MXU-native NT matmul), so the (TB, 6) tile is consumed as-is.
    h1 = lax.dot_general(w1, x, (((1,), (1,)), ((), ())),
                         preferred_element_type=jnp.float32)
    h1 = jax.nn.sigmoid(h1 + b1)                                        # (10, TB)

    h2 = jnp.dot(w2, h1, preferred_element_type=jnp.float32)
    h2 = jax.nn.sigmoid(h2 + b2)                                        # (10, TB)

    logits = jnp.dot(w3, h2, preferred_element_type=jnp.float32) + b3   # (2, TB)

    # Numerically stable log_softmax over the class axis (axis 0):
    # a 2-row sublane reduce per lane-dense column.
    m = jnp.max(logits, axis=0, keepdims=True)
    shifted = logits - m
    lse = jnp.log(jnp.sum(jnp.exp(shifted), axis=0, keepdims=True))
    o_ref[...] = (shifted - lse).astype(o_ref.dtype)                    # (2, TB)


def net_forward(x, w_slab):
    B = x.shape[0]

    # Batch tile selection:
    #  * B <= 256: one full-extent block (block == array dims, always legal).
    #  * B  > 256: tiles are multiples of 128 (lane-dense batch-in-lanes
    #    output), capped at 4096 rows, and there are always >= 2 grid steps so
    #    the "parallel" axis can shard across both v7x TensorCores.
    # Ragged last tiles are handled by Pallas edge-block masking — no
    # wrapper-side padding pass over x.
    if B <= 256:
        TB = B
    else:
        TB = min(4096, _round_up(pl.cdiv(B, 2), 128))
    n_tiles = pl.cdiv(B, TB)

    flops = 2 * B * (INPUT_SIZE * HIDDEN_SIZE
                     + HIDDEN_SIZE * HIDDEN_SIZE
                     + HIDDEN_SIZE * OUTPUT_SIZE)
    transcendentals = B * (2 * HIDDEN_SIZE + OUTPUT_SIZE + 1)
    bytes_accessed = 4 * (B * INPUT_SIZE + w_slab.size + B * OUTPUT_SIZE)

    grid_spec = pltpu.PrefetchScalarGridSpec(
        num_scalar_prefetch=0,
        grid=(n_tiles,),
        in_specs=[
            pl.BlockSpec((TB, INPUT_SIZE), lambda i: (i, 0)),            # batch-tiled x
            pl.BlockSpec((_SLAB_ROWS, _SLAB_COLS), lambda i: (0, 0)),    # resident weights
        ],
        out_specs=pl.BlockSpec((OUTPUT_SIZE, TB), lambda i: (0, i)),     # narrow, lane-dense
    )

    out_t = pl.pallas_call(
        mlp_kernel,
        out_shape=jax.ShapeDtypeStruct((OUTPUT_SIZE, B), jnp.float32),
        grid_spec=grid_spec,
        compiler_params=pltpu.CompilerParams(
            dimension_semantics=("parallel",)),
        cost_estimate=pl.CostEstimate(
            flops=flops,
            transcendentals=transcendentals,
            bytes_accessed=bytes_accessed),
    )(x, w_slab)

    return out_t.T  # (B, OUTPUT_SIZE) — PyTorch convention


def init_params(key):
    # Deterministic init mimicking PyTorch Linear default:
    # U(-1/sqrt(fan_in), +1/sqrt(fan_in)); weights in (out, in) orientation.
    ks = jax.random.split(key, 6)

    def linear(kw, kb, fan_in, fan_out):
        bound = 1.0 / jnp.sqrt(jnp.float32(fan_in))
        w = jax.random.uniform(kw, (fan_out, fan_in), jnp.float32, -bound, bound)
        b = jax.random.uniform(kb, (fan_out,), jnp.float32, -bound, bound)
        return w, b

    return (linear(ks[0], ks[1], INPUT_SIZE, HIDDEN_SIZE),
            linear(ks[2], ks[3], HIDDEN_SIZE, HIDDEN_SIZE),
            linear(ks[4], ks[5], HIDDEN_SIZE, OUTPUT_SIZE))


def pack_params(params):
    """Pack (w, b) per layer into one aligned (40, 16) f32 slab."""
    (w1, b1), (w2, b2), (w3, b3) = params
    slab = jnp.zeros((_SLAB_ROWS, _SLAB_COLS), jnp.float32)
    slab = slab.at[_W1_ROW:_W1_ROW + HIDDEN_SIZE, 0:INPUT_SIZE].set(w1)
    slab = slab.at[_W1_ROW:_W1_ROW + HIDDEN_SIZE, INPUT_SIZE].set(b1)
    slab = slab.at[_W2_ROW:_W2_ROW + HIDDEN_SIZE, 0:HIDDEN_SIZE].set(w2)
    slab = slab.at[_W2_ROW:_W2_ROW + HIDDEN_SIZE, HIDDEN_SIZE].set(b2)
    slab = slab.at[_W3_ROW:_W3_ROW + OUTPUT_SIZE, 0:HIDDEN_SIZE].set(w3)
    slab = slab.at[_W3_ROW:_W3_ROW + OUTPUT_SIZE, HIDDEN_SIZE].set(b3)
    return slab


def net_forward_ref(x, params):
    # Pure-JAX reference (PyTorch semantics) for correctness checking.
    (w1, b1), (w2, b2), (w3, b3) = params
    h1 = jax.nn.sigmoid(x @ w1.T + b1)
    h2 = jax.nn.sigmoid(h1 @ w2.T + b2)
    logits = h2 @ w3.T + b3
    return jax.nn.log_softmax(logits, axis=-1)


if __name__ == "__main__":
    key = jax.random.PRNGKey(0)
    kx, kx2, kp = jax.random.split(key, 3)

    params = init_params(kp)
    w_slab = pack_params(params)

    # Case 1: small single-tile batch.
    batch = 8
    x = jax.random.normal(kx, (batch, INPUT_SIZE), dtype=jnp.float32)
    out = jax.block_until_ready(net_forward(x, w_slab))
    assert out.shape == (batch, OUTPUT_SIZE)
    row_sums = jnp.sum(jnp.exp(out), axis=-1)
    assert bool(jnp.all(jnp.abs(row_sums - 1.0) < 1e-4))
    ref = net_forward_ref(x, params)
    assert bool(jnp.all(jnp.abs(out - ref) < 1e-4))

    # Case 2: multi-tile batch with a ragged last tile (exercises edge-block
    # masking and the >=2-grid-step path used for v7x megacore sharding).
    batch2 = 300
    x2 = jax.random.normal(kx2, (batch2, INPUT_SIZE), dtype=jnp.float32)
    out2 = jax.block_until_ready(net_forward(x2, w_slab))
    ref2 = net_forward_ref(x2, params)
    assert out2.shape == (batch2, OUTPUT_SIZE)
    assert bool(jnp.all(jnp.abs(out2 - ref2) < 1e-4))

    print("KERNEL_OK")
</pallas_src>

<mosaic_0001>
module attributes {stable_mosaic.version = 11 : i64} {
  func.func @mlp_kernel(%arg0: i32, %arg1: memref<8x6xf32, #tpu.memory_space<vmem>>, %arg2: memref<40x16xf32, #tpu.memory_space<vmem>>, %arg3: memref<2x8xf32, #tpu.memory_space<vmem>>) attributes {dimension_semantics = [#tpu.dimension_semantics<parallel>], iteration_bounds = array<i64: 1>, scalar_prefetch = 0 : i64, scratch_operands = 0 : i64, tpu.core_type = #tpu.core_type<tc>, window_params = [{transform_indices = @transform_0, window_bounds = array<i64: 8, 6>}, {pipeline_mode = #tpu.pipeline_mode<synchronous>, transform_indices = @transform_1, window_bounds = array<i64: 40, 16>}, {transform_indices = @transform_2, window_bounds = array<i64: 2, 8>}]} {
    %c0 = arith.constant 0 : index
    %c0_0 = arith.constant 0 : index
    %0 = vector.load %arg1[%c0, %c0_0] : memref<8x6xf32, #tpu.memory_space<vmem>>, vector<8x6xf32>
    %c0_1 = arith.constant 0 : index
    %c0_2 = arith.constant 0 : index
    %1 = vector.load %arg2[%c0_1, %c0_2] : memref<40x16xf32, #tpu.memory_space<vmem>>, vector<10x6xf32>
    %c0_3 = arith.constant 0 : index
    %c6 = arith.constant 6 : index
    %2 = vector.load %arg2[%c0_3, %c6] : memref<40x16xf32, #tpu.memory_space<vmem>>, vector<10x1xf32>
    %c16 = arith.constant 16 : index
    %c0_4 = arith.constant 0 : index
    %3 = vector.load %arg2[%c16, %c0_4] : memref<40x16xf32, #tpu.memory_space<vmem>>, vector<10x10xf32>
    %c16_5 = arith.constant 16 : index
    %c10 = arith.constant 10 : index
    %4 = vector.load %arg2[%c16_5, %c10] : memref<40x16xf32, #tpu.memory_space<vmem>>, vector<10x1xf32>
    %c32 = arith.constant 32 : index
    %c0_6 = arith.constant 0 : index
    %5 = vector.load %arg2[%c32, %c0_6] : memref<40x16xf32, #tpu.memory_space<vmem>>, vector<2x10xf32>
    %c32_7 = arith.constant 32 : index
    %c10_8 = arith.constant 10 : index
    %6 = vector.load %arg2[%c32_7, %c10_8] : memref<40x16xf32, #tpu.memory_space<vmem>>, vector<2x1xf32>
    %cst = arith.constant dense<0.000000e+00> : vector<10x8xf32>
    %7 = tpu.matmul %1, %0, %cst {dimension_numbers = #tpu.dot_dimension_numbers<[1], [1], [0], [0], [0, 0, 1, 0], [], []>} : vector<10x6xf32>, vector<8x6xf32>, vector<10x8xf32> -> vector<10x8xf32>
    %8 = vector.broadcast %2 : vector<10x1xf32> to vector<10x8xf32>
    %9 = arith.addf %7, %8 : vector<10x8xf32>
    %10 = arith.negf %9 : vector<10x8xf32>
    %11 = math.exp %10 : vector<10x8xf32>
    %cst_9 = arith.constant 1.000000e+00 : f32
    %12 = vector.broadcast %cst_9 : f32 to vector<10x8xf32>
    %13 = arith.addf %12, %11 : vector<10x8xf32>
    %14 = arith.divf %12, %13 : vector<10x8xf32>
    %cst_10 = arith.constant dense<0.000000e+00> : vector<10x8xf32>
    %15 = tpu.matmul %3, %14, %cst_10 {dimension_numbers = #tpu.dot_dimension_numbers<[1], [0], [0], [1], [0, 0, 1, 1], [], []>} : vector<10x10xf32>, vector<10x8xf32>, vector<10x8xf32> -> vector<10x8xf32>
    %16 = vector.broadcast %4 : vector<10x1xf32> to vector<10x8xf32>
    %17 = arith.addf %15, %16 : vector<10x8xf32>
    %18 = arith.negf %17 : vector<10x8xf32>
    %19 = math.exp %18 : vector<10x8xf32>
    %cst_11 = arith.constant 1.000000e+00 : f32
    %20 = vector.broadcast %cst_11 : f32 to vector<10x8xf32>
    %21 = arith.addf %20, %19 : vector<10x8xf32>
    %22 = arith.divf %20, %21 : vector<10x8xf32>
    %cst_12 = arith.constant dense<0.000000e+00> : vector<2x8xf32>
    %23 = tpu.matmul %5, %22, %cst_12 {dimension_numbers = #tpu.dot_dimension_numbers<[1], [0], [0], [1], [0, 0, 1, 1], [], []>} : vector<2x10xf32>, vector<10x8xf32>, vector<2x8xf32> -> vector<2x8xf32>
    %24 = vector.broadcast %6 : vector<2x1xf32> to vector<2x8xf32>
    %25 = arith.addf %23, %24 : vector<2x8xf32>
    %cst_13 = arith.constant dense<0xFF800000> : vector<8xf32>
    %26 = vector.multi_reduction <maximumf>, %25, %cst_13 [0] : vector<2x8xf32> to vector<8xf32>
    %27 = vector.shape_cast %26 : vector<8xf32> to vector<1x8xf32>
    %28 = vector.broadcast %27 : vector<1x8xf32> to vector<2x8xf32>
    %29 = arith.subf %25, %28 : vector<2x8xf32>
    %30 = math.exp %29 : vector<2x8xf32>
    %cst_14 = arith.constant dense<0.000000e+00> : vector<8xf32>
    %31 = vector.multi_reduction <add>, %30, %cst_14 [0] : vector<2x8xf32> to vector<8xf32>
    %32 = vector.shape_cast %31 : vector<8xf32> to vector<1x8xf32>
    %33 = math.log %32 : vector<1x8xf32>
    %34 = vector.broadcast %33 : vector<1x8xf32> to vector<2x8xf32>
    %35 = arith.subf %29, %34 : vector<2x8xf32>
    %c0_15 = arith.constant 0 : index
    %c0_16 = arith.constant 0 : index
    %36 = vector.load %arg3[%c0_15, %c0_16] : memref<2x8xf32, #tpu.memory_space<vmem>>, vector<2x8xf32>
    tpu.vector_store %arg3[%c0_15, %c0_16], %35 {strides = array<i32>} : memref<2x8xf32, #tpu.memory_space<vmem>>, vector<2x8xf32>,
    return
  }
  func.func @transform_0(%arg0: i32) -> (i32, i32) {
    %c0_i32 = arith.constant 0 : i32
    %c0_i32_0 = arith.constant 0 : i32
    return %arg0, %c0_i32 : i32, i32
  }
  func.func @transform_1(%arg0: i32) -> (i32, i32) {
    %c0_i32 = arith.constant 0 : i32
    %c0_i32_0 = arith.constant 0 : i32
    %c0_i32_1 = arith.constant 0 : i32
    return %c0_i32, %c0_i32_0 : i32, i32
  }
  func.func @transform_2(%arg0: i32) -> (i32, i32) {
    %c0_i32 = arith.constant 0 : i32
    %c0_i32_0 = arith.constant 0 : i32
    return %c0_i32, %arg0 : i32, i32
  }
}

</mosaic_0001>

<llo_original>
// kernel: tpu_custom_call.1
$region0: #{tpu_custom_call.1}
  #allocation0 [shape = 'u32[]', space=smem, size = 0x4, offset = 0x4, fixed_abs, tag = 'smem constant byte address 0x4 - core index']
  #allocation1 [shape = 'u32[144,128]{1,0:T(1,128)}', space=vmem, size = 0x12000, scoped, tag = 'internal scratch']
  %s0 = inlined_call_operand.vmem [shape: f32[8,6], index: 0, kind: input, shape index: {}]
  %s1 = inlined_call_operand.vmem [shape: f32[40,16], index: 1, kind: input, shape index: {}]
  %s2 = inlined_call_operand.hbm [shape: f32[2,8], index: 2, kind: output, shape index: {}]
  %s3 = sld [smem:[#allocation0]]
  $region18: #{tpu_custom_call.1} parent=0
    _
  %s5 = ssub.s32 1, %s3
  %s6 = scalar_select 0, %s5, %s3
  $region1: #{tpu_custom_call.1} parent=0
    #allocation2 [shape = 'u8[1024]{0}', space=vmem, size = 0x400, scoped, tag = 'output window, operand 0, single buffered']
    #allocation3 [shape = 's32[1]{0}', space=sflag, size = 0x4, scoped, tag = 'scoped memory for tpu_custom_call.1']
    %7 = vsyncpa [#allocation3], 0
    // Predicated region
    $region2: #{tpu_custom_call.1} parent=1 // pred_check
      _
    $region3: #{tpu_custom_call.1} parent=1 // pred_check_branch
      %9 = sbr.rel (0) target = $region5
    $region4: #{tpu_custom_call.1} parent=1 // pred_region
      _
    $region5: #{tpu_custom_call.1} parent=1 // pred_fallthru
      _
    // Predicated region
    $region6: #{tpu_custom_call.1} parent=1 // pred_check
      _
    $region7: #{tpu_custom_call.1} parent=1 // pred_check_branch
      %11 = sbr.rel (0) target = $region9
    $region8: #{tpu_custom_call.1} parent=1 // pred_region
      _
    $region9: #{tpu_custom_call.1} parent=1 // pred_fallthru
      _
    %v12 = vld [vmem:[%s0] sm:$0xff]
    %v13 = vld [vmem:[%s1] sm:$0xff]
    %v14 = vld [vmem:[%s1 + $0x8] sm:$0x3]
    %v15 = vld [vmem:[%s1 + $0x10] sm:$0xff]
    %v16 = vld [vmem:[%s1 + $0x18] sm:$0x3]
    %v17 = vld [vmem:[%s1 + $0x20] sm:$0x3]
    %19 = vset.pattern.permute.xlu0 6
    %20 = vperm.xlu0 %19, %v13
    %v21 = vpop.permute.xlu0 %20
    %24 = vset.pattern.permute.xlu0 6
    %25 = vperm.xlu0 %24, %v14
    %v26 = vpop.permute.xlu0 %25
    %vm28 = vcmask 48128
    %v29 = vsel %vm28, %v13, 0
    %v31 = vsel %vm28, %v14, 0
    %v34 = vsel %vm28, %v12, 0
    %36 = vmatprep.subr.mxu0 0.0
    %37 = vmatpush1.xpose.msra.mxu0 %v34
    %38 = vmatprep.subr.mxu0 0.0
    %39 = vmatpush1.xpose.msra.mxu0 0.0
    %40 = vmatprep.subr.mxu0 0.0
    %41 = vmatpush1.xpose.msra.mxu0 0.0
    %42 = vmatprep.subr.mxu0 0.0
    %43 = vmatpush1.xpose.msra.mxu0 0.0
    %44 = vmatprep.subr.mxu0 0.0
    %45 = vmatpush1.xpose.msra.mxu0 0.0
    %46 = vmatprep.subr.mxu0 0.0
    %47 = vmatpush1.xpose.msra.mxu0 0.0
    %48 = vmatprep.subr.mxu0 0.0
    %49 = vmatpush1.xpose.msra.mxu0 0.0
    %50 = vmatprep.subr.mxu0 0.0
    %51 = vmatpush1.xpose.msra.mxu0 0.0
    %52 = vmatprep.subr.mxu0 0.0
    %53 = vmatpush1.xpose.msra.mxu0 0.0
    %54 = vmatprep.subr.mxu0 0.0
    %55 = vmatpush1.xpose.msra.mxu0 0.0
    %56 = vmatprep.subr.mxu0 0.0
    %57 = vmatpush1.xpose.msra.mxu0 0.0
    %58 = vmatprep.subr.mxu0 0.0
    %59 = vmatpush1.xpose.msra.mxu0 0.0
    %60 = vmatprep.subr.mxu0 0.0
    %61 = vmatpush1.xpose.msra.mxu0 0.0
    %62 = vmatprep.subr.mxu0 0.0
    %63 = vmatpush1.xpose.msra.mxu0 0.0
    %64 = vmatprep.subr.mxu0 0.0
    %65 = vmatpush1.xpose.msra.mxu0 0.0
    %66 = vmatprep.subr.mxu0 0.0
    %67 = vmatpush1.xpose.msra.mxu0 0.0
    %68 = vmatprep.subr.mxu0 0.0
    %69 = vmatpush1.xpose.msra.mxu0 0.0
    %70 = vmatprep.subr.mxu0 0.0
    %71 = vmatpush1.xpose.msra.mxu0 0.0
    %72 = vmatprep.subr.mxu0 0.0
    %73 = vmatpush1.xpose.msra.mxu0 0.0
    %74 = vmatprep.subr.mxu0 0.0
    %75 = vmatpush1.xpose.msra.mxu0 0.0
    %76 = vmatprep.subr.mxu0 0.0
    %77 = vmatpush1.xpose.msra.mxu0 0.0
    %78 = vmatprep.subr.mxu0 0.0
    %79 = vmatpush1.xpose.msra.mxu0 0.0
    %80 = vmatprep.subr.mxu0 0.0
    %81 = vmatpush1.xpose.msra.mxu0 0.0
    %82 = vmatprep.subr.mxu0 0.0
    %83 = vmatpush1.xpose.msra.mxu0 0.0
    %84 = vmatprep.subr.mxu0 0.0
    %85 = vmatpush1.xpose.msra.mxu0 0.0
    %86 = vmatprep.subr.mxu0 0.0
    %87 = vmatpush1.xpose.msra.mxu0 0.0
    %88 = vmatprep.subr.mxu0 0.0
    %89 = vmatpush1.xpose.msra.mxu0 0.0
    %90 = vmatprep.subr.mxu0 0.0
    %91 = vmatpush1.xpose.msra.mxu0 0.0
    %92 = vmatprep.subr.mxu0 0.0
    %93 = vmatpush1.xpose.msra.mxu0 0.0
    %94 = vmatprep.subr.mxu0 0.0
    %95 = vmatpush1.xpose.msra.mxu0 0.0
    %96 = vmatprep.subr.mxu0 0.0
    %97 = vmatpush1.xpose.msra.mxu0 0.0
    %98 = vmatprep.subr.mxu0 0.0
    %99 = vmatpush1.xpose.msra.mxu0 0.0
    %100 = vmatprep.mubr.f32.mxu0 0.0
    %101 = vmatmul.mubr.f32.gmra.mrb[0].mxu0 %v29
    %v102 = vpop.f32.mrb[0].mxu0
    %v103 = vadd.f32 %v21, %v102
    %v104 = vpop.f32.mrb[0].mxu0
    %105 = vmatprep.mubr.f32.mxu0 0.0
    %106 = vmatmul.mubr.f32.gmra.mrb[0].mxu0 %v31
    %v107 = vpop.f32.mrb[0].mxu0
    %v108 = vadd.f32 %v26, %v107
    %v109 = vpop.f32.mrb[0].mxu0
    %110 = vdwg.mxu0
    %v111 = vxor.u32 %v103, 2147483648
    %v112 = vxor.u32 %v108, 2147483648
    %v113 = vmul.f32 %v111, 1.442695
    %v114 = vpow.pop %v113
    %v115 = vmul.f32 %v112, 1.442695
    %v116 = vpow.pop %v115
    %v117 = vadd.f32 %v114, 1.0
    %v118 = vadd.f32 %v116, 1.0
    %v119 = vrcp.pop %v117
    %v120 = vmul.f32 1.0, %v119
    %v121 = vrcp.pop %v118
    %v122 = vmul.f32 1.0, %v121
    %124 = vset.pattern.permute.xlu0 10
    %125 = vperm.xlu0 %124, %v15
    %v126 = vpop.permute.xlu0 %125
    %129 = vset.pattern.permute.xlu0 10
    %130 = vperm.xlu0 %129, %v16
    %v131 = vpop.permute.xlu0 %130
    %vm133 = vcmask 80896
    %v134 = vsel %vm133, %v15, 0
    %v136 = vsel %vm133, %v16, 0
    %vm138 = vcmask 1041408
    %v140 = vsel %vm138, %v122, 0
    %142 = vmatprep.subr.mxu0 0.0
    %143 = vmatpush1.msra.mxu0 %v120
    %144 = vmatprep.subr.mxu0 0.0
    %145 = vmatpush1.msra.mxu0 %v140
    %146 = vmatprep.subr.mxu0 0.0
    %147 = vmatpush1.msra.mxu0 0.0
    %148 = vmatprep.subr.mxu0 0.0
    %149 = vmatpush1.msra.mxu0 0.0
    %150 = vmatprep.subr.mxu0 0.0
    %151 = vmatpush1.msra.mxu0 0.0
    %152 = vmatprep.subr.mxu0 0.0
    %153 = vmatpush1.msra.mxu0 0.0
    %154 = vmatprep.subr.mxu0 0.0
    %155 = vmatpush1.msra.mxu0 0.0
    %156 = vmatprep.subr.mxu0 0.0
    %157 = vmatpush1.msra.mxu0 0.0
    %158 = vmatprep.subr.mxu0 0.0
    %159 = vmatpush1.msra.mxu0 0.0
    %160 = vmatprep.subr.mxu0 0.0
    %161 = vmatpush1.msra.mxu0 0.0
    %162 = vmatprep.subr.mxu0 0.0
    %163 = vmatpush1.msra.mxu0 0.0
    %164 = vmatprep.subr.mxu0 0.0
    %165 = vmatpush1.msra.mxu0 0.0
    %166 = vmatprep.subr.mxu0 0.0
    %167 = vmatpush1.msra.mxu0 0.0
    %168 = vmatprep.subr.mxu0 0.0
    %169 = vmatpush1.msra.mxu0 0.0
    %170 = vmatprep.subr.mxu0 0.0
    %171 = vmatpush1.msra.mxu0 0.0
    %172 = vmatprep.subr.mxu0 0.0
    %173 = vmatpush1.msra.mxu0 0.0
    %174 = vmatprep.subr.mxu0 0.0
    %175 = vmatpush1.msra.mxu0 0.0
    %176 = vmatprep.subr.mxu0 0.0
    %177 = vmatpush1.msra.mxu0 0.0
    %178 = vmatprep.subr.mxu0 0.0
    %179 = vmatpush1.msra.mxu0 0.0
    %180 = vmatprep.subr.mxu0 0.0
    %181 = vmatpush1.msra.mxu0 0.0
    %182 = vmatprep.subr.mxu0 0.0
    %183 = vmatpush1.msra.mxu0 0.0
    %184 = vmatprep.subr.mxu0 0.0
    %185 = vmatpush1.msra.mxu0 0.0
    %186 = vmatprep.subr.mxu0 0.0
    %187 = vmatpush1.msra.mxu0 0.0
    %188 = vmatprep.subr.mxu0 0.0
    %189 = vmatpush1.msra.mxu0 0.0
    %190 = vmatprep.subr.mxu0 0.0
    %191 = vmatpush1.msra.mxu0 0.0
    %192 = vmatprep.subr.mxu0 0.0
    %193 = vmatpush1.msra.mxu0 0.0
    %194 = vmatprep.subr.mxu0 0.0
    %195 = vmatpush1.msra.mxu0 0.0
    %196 = vmatprep.subr.mxu0 0.0
    %197 = vmatpush1.msra.mxu0 0.0
    %198 = vmatprep.subr.mxu0 0.0
    %199 = vmatpush1.msra.mxu0 0.0
    %200 = vmatprep.subr.mxu0 0.0
    %201 = vmatpush1.msra.mxu0 0.0
    %202 = vmatprep.subr.mxu0 0.0
    %203 = vmatpush1.msra.mxu0 0.0
    %204 = vmatprep.subr.mxu0 0.0
    %205 = vmatpush1.msra.mxu0 0.0
    %206 = vmatprep.mubr.f32.mxu0 0.0
    %207 = vmatmul.mubr.f32.gmra.mrb[0].mxu0 %v134
    %v208 = vpop.f32.mrb[0].mxu0
    %v209 = vadd.f32 %v126, %v208
    %v210 = vpop.f32.mrb[0].mxu0
    %211 = vmatprep.mubr.f32.mxu0 0.0
    %212 = vmatmul.mubr.f32.gmra.mrb[0].mxu0 %v136
    %v213 = vpop.f32.mrb[0].mxu0
    %v214 = vadd.f32 %v131, %v213
    %v215 = vpop.f32.mrb[0].mxu0
    %216 = vdwg.mxu0
    %v217 = vxor.u32 %v209, 2147483648
    %v218 = vxor.u32 %v214, 2147483648
    %v219 = vmul.f32 %v217, 1.442695
    %v220 = vpow.pop %v219
    %v221 = vmul.f32 %v218, 1.442695
    %v222 = vpow.pop %v221
    %v223 = vadd.f32 %v220, 1.0
    %v224 = vadd.f32 %v222, 1.0
    %v225 = vrcp.pop %v223
    %v226 = vmul.f32 1.0, %v225
    %v227 = vrcp.pop %v224
    %v228 = vmul.f32 1.0, %v227
    %230 = vset.pattern.permute.xlu0 10
    %231 = vperm.xlu0 %230, %v17
    %v232 = vpop.permute.xlu0 %231
    %v234 = vsel %vm133, %v17, 0
    %v237 = vsel %vm138, %v228, 0
    %239 = vmatprep.subr.mxu0 0.0
    %240 = vmatpush1.msra.mxu0 %v226
    %241 = vmatprep.subr.mxu0 0.0
    %242 = vmatpush1.msra.mxu0 %v237
    %243 = vmatprep.subr.mxu0 0.0
    %244 = vmatpush1.msra.mxu0 0.0
    %245 = vmatprep.subr.mxu0 0.0
    %246 = vmatpush1.msra.mxu0 0.0
    %247 = vmatprep.subr.mxu0 0.0
    %248 = vmatpush1.msra.mxu0 0.0
    %249 = vmatprep.subr.mxu0 0.0
    %250 = vmatpush1.msra.mxu0 0.0
    %251 = vmatprep.subr.mxu0 0.0
    %252 = vmatpush1.msra.mxu0 0.0
    %253 = vmatprep.subr.mxu0 0.0
    %254 = vmatpush1.msra.mxu0 0.0
    %255 = vmatprep.subr.mxu0 0.0
    %256 = vmatpush1.msra.mxu0 0.0
    %257 = vmatprep.subr.mxu0 0.0
    %258 = vmatpush1.msra.mxu0 0.0
    %259 = vmatprep.subr.mxu0 0.0
    %260 = vmatpush1.msra.mxu0 0.0
    %261 = vmatprep.subr.mxu0 0.0
    %262 = vmatpush1.msra.mxu0 0.0
    %263 = vmatprep.subr.mxu0 0.0
    %264 = vmatpush1.msra.mxu0 0.0
    %265 = vmatprep.subr.mxu0 0.0
    %266 = vmatpush1.msra.mxu0 0.0
    %267 = vmatprep.subr.mxu0 0.0
    %268 = vmatpush1.msra.mxu0 0.0
    %269 = vmatprep.subr.mxu0 0.0
    %270 = vmatpush1.msra.mxu0 0.0
    %271 = vmatprep.subr.mxu0 0.0
    %272 = vmatpush1.msra.mxu0 0.0
    %273 = vmatprep.subr.mxu0 0.0
    %274 = vmatpush1.msra.mxu0 0.0
    %275 = vmatprep.subr.mxu0 0.0
    %276 = vmatpush1.msra.mxu0 0.0
    %277 = vmatprep.subr.mxu0 0.0
    %278 = vmatpush1.msra.mxu0 0.0
    %279 = vmatprep.subr.mxu0 0.0
    %280 = vmatpush1.msra.mxu0 0.0
    %281 = vmatprep.subr.mxu0 0.0
    %282 = vmatpush1.msra.mxu0 0.0
    %283 = vmatprep.subr.mxu0 0.0
    %284 = vmatpush1.msra.mxu0 0.0
    %285 = vmatprep.subr.mxu0 0.0
    %286 = vmatpush1.msra.mxu0 0.0
    %287 = vmatprep.subr.mxu0 0.0
    %288 = vmatpush1.msra.mxu0 0.0
    %289 = vmatprep.subr.mxu0 0.0
    %290 = vmatpush1.msra.mxu0 0.0
    %291 = vmatprep.subr.mxu0 0.0
    %292 = vmatpush1.msra.mxu0 0.0
    %293 = vmatprep.subr.mxu0 0.0
    %294 = vmatpush1.msra.mxu0 0.0
    %295 = vmatprep.subr.mxu0 0.0
    %296 = vmatpush1.msra.mxu0 0.0
    %297 = vmatprep.subr.mxu0 0.0
    %298 = vmatpush1.msra.mxu0 0.0
    %299 = vmatprep.subr.mxu0 0.0
    %300 = vmatpush1.msra.mxu0 0.0
    %301 = vmatprep.subr.mxu0 0.0
    %302 = vmatpush1.msra.mxu0 0.0
    %303 = vmatprep.mubr.f32.mxu0 0.0
    %304 = vmatmul.mubr.f32.gmra.mrb[0].mxu0 %v234
    %v305 = vpop.f32.mrb[0].mxu0
    %v306 = vadd.f32 %v232, %v305
    %v307 = vpop.f32.mrb[0].mxu0
    %308 = vdwg.mxu0
    %vm309 = vcmask 58368
    %v310 = vsel %vm309, %v306, -inf
    %v311 = vrot.slane %v310, 4
    %v312 = vmax.f32 %v310, %v311
    %v313 = vrot.slane %v312, 2
    %v314 = vmax.f32 %v312, %v313
    %v315 = vrot.slane %v314, 1
    %v316 = vmax.f32 %v314, %v315
    %v317 = vsub.f32 %v306, %v316
    %v318 = vmul.f32 %v317, 1.442695
    %v319 = vpow.pop %v318
    %v320 = vsel %vm309, %v319, 0.0
    %v321 = vrot.slane %v320, 4
    %v322 = vadd.f32 %v320, %v321
    %v323 = vrot.slane %v322, 2
    %v324 = vadd.f32 %v322, %v323
    %v325 = vrot.slane %v324, 1
    %v326 = vadd.f32 %v324, %v325
    %v327 = vlog2.pop %v326
    %v328 = vmul.f32 %v327, 0.6931472
    %v329 = vsub.f32 %v317, %v328
    %330 = vst.msk [vmem:[#allocation2] sm:$0x3] %vm309, %v329
    // Predicated region
    $region10: #{tpu_custom_call.1} parent=1 // pred_check
      _
    $region11: #{tpu_custom_call.1} parent=1 // pred_check_branch
      %332 = sbr.rel (0) target = $region13
    $region12: #{tpu_custom_call.1} parent=1 // pred_region
      %s334 = ssub.s32 32, 32
      %335 = vsyncadd [#allocation3], %s334
      %s337 = sshll.u32 [#allocation2], 4
      %s338 = int_to_ptr.vmem [resolvable:$true] %s337
      %340 = dma.vmem_to_hbm [thread:$0]  %s338, 32, %s2, [#allocation3]
    $region13: #{tpu_custom_call.1} parent=1 // pred_fallthru
      _
    // Predicated region
    $region14: #{tpu_custom_call.1} parent=1 // pred_check
      _
    $region15: #{tpu_custom_call.1} parent=1 // pred_check_branch
      %342 = sbr.rel (0) target = $region17
    $region16: #{tpu_custom_call.1} parent=1 // pred_region
      %343 = dma.done [#allocation3], 32
    $region17: #{tpu_custom_call.1} parent=1 // pred_fallthru
      _
    %344 = vsyncpa [#allocation3], 1

</llo_original>
